<compile_context>
chip_gen: v6e
topology: v6e:2x2x1
jax: 0.10.0
libtpu: 0.0.40
codegen_flags: <defaults>
</compile_context>

<pallas_src>
import jax
import jax.numpy as jnp
from jax.experimental import pallas as pl
from jax.experimental.pallas import tpu as pltpu

SPLIT = 128
N_SPLITS = 4
C_TOTAL = SPLIT * N_SPLITS  # forward implies dim=1 has 512 channels


def _split_kernel(x_ref, s0_ref, s1_ref, s2_ref, s3_ref):
    # x_ref: (N, 4, TR, LL) lane-dense slab; s*_ref: (N, TR, LL) each.
    # Static index on an outer (non-tiled) axis -> straight tile copies.
    s0_ref[...] = x_ref[:, 0, :, :]
    s1_ref[...] = x_ref[:, 1, :, :]
    s2_ref[...] = x_ref[:, 2, :, :]
    s3_ref[...] = x_ref[:, 3, :, :]


def _largest_divisor_leq(n, cap):
    """Largest divisor of n that is <= cap (n, cap small host ints)."""
    if cap >= n:
        return n
    best = 1
    d = 1
    while d * d <= n:
        if n % d == 0:
            if d <= cap and d > best:
                best = d
            q = n // d
            if q <= cap and q > best:
                best = q
        d += 1
    return best


def _target_in_block_bytes():
    """Per-generation input-block budget (host-side heuristic)."""
    try:
        kind = jax.devices()[0].device_kind.lower()
    except Exception:
        kind = ""
    if "v6" in kind:
        return 4 << 20   # v6e: 128 MiB physical VMEM, bigger tiles amortize per-step cost
    return 2 << 20       # v5e (16 MiB scoped default) / v7x (64 MiB VMEM): conservative


def split_cat_forward(v1):
    """v1: (N, 512, H, W). Returns (concat, (s0, s1, s2, s3)) matching Model.forward."""
    N, C, H, W = v1.shape
    assert C == C_TOTAL, f"forward requires {C_TOTAL} channels, got {C}"

    HW = H * W
    L = SPLIT * HW                              # elements per split per batch row
    itemsize = jnp.dtype(v1.dtype).itemsize

    # Lane dim: largest multiple-of-128 divisor of L, capped at 1024 lanes.
    d_lane = _largest_divisor_leq(HW, 1024 // 128)
    LL = 128 * d_lane                           # multiple of 128, divides L
    R = HW // d_lane                            # L == R * LL

    # Row tile: multiple of 8 (or the full R dim), sized from the VMEM budget.
    target = _target_in_block_bytes()
    rows_budget = max(8, target // (N * N_SPLITS * LL * itemsize))
    if R <= rows_budget:
        TR = R                                  # full dim -> always layout-legal
    else:
        TR = max(8, (min(rows_budget, R) // 8) * 8)
    grid_r = pl.cdiv(R, TR)                     # ragged last tile handled by Pallas

    in_block_bytes = N * N_SPLITS * TR * LL * itemsize
    # double-buffered input + 4 double-buffered outputs ~= 4 * in_block; add headroom.
    vmem_limit = int(min(48 << 20, max(32 << 20, 6 * in_block_bytes)))

    # Row-major reshape of contiguous NCHW data; logically free.
    # TODO(synk): verify in HLO/xprof that this reshape (and the NCHW reshape of the
    # outputs below) lowers to a bitcast and not a relayout copy; if it does copy,
    # return the flat (N, R, LL) splits to consumers instead.
    x_r = v1.reshape(N, N_SPLITS, R, LL)

    splits_flat = pl.pallas_call(
        _split_kernel,
        out_shape=tuple(
            jax.ShapeDtypeStruct((N, R, LL), v1.dtype) for _ in range(N_SPLITS)
        ),
        grid_spec=pltpu.PrefetchScalarGridSpec(
            num_scalar_prefetch=0,
            grid=(grid_r,),
            in_specs=[
                # minor-2 block dims (TR, LL): multiple of (8,128) or full dims.
                pl.BlockSpec((N, N_SPLITS, TR, LL), lambda j: (0, 0, j, 0)),
            ],
            out_specs=tuple(
                pl.BlockSpec((N, TR, LL), lambda j: (0, j, 0))
                for _ in range(N_SPLITS)
            ),
        ),
        compiler_params=pltpu.CompilerParams(
            dimension_semantics=("parallel",),
            vmem_limit_bytes=vmem_limit,
        ),
    )(x_r)

    splits = tuple(s.reshape(N, SPLIT, H, W) for s in splits_flat)
    # cat(split(x), dim=1) == x bit-exactly: return the input, no data movement.
    concat = v1
    return concat, splits


def init_params(key):
    """Deterministic parameter init mirroring Model.__init__ shapes.
    NOTE: the `features` stack is never used by Model.forward; created only to
    mirror the module definition."""
    k1, k2 = jax.random.split(key)
    params = {
        "bn0": {"gamma": jnp.ones((32,), jnp.float32),
                "beta": jnp.zeros((32,), jnp.float32),
                "mean": jnp.zeros((32,), jnp.float32),
                "var": jnp.ones((32,), jnp.float32)},
        "conv2_w": jax.random.normal(k1, (64, 32, 3, 3), jnp.float32) * 0.02,
        "bn2": {"gamma": jnp.ones((64,), jnp.float32),
                "beta": jnp.zeros((64,), jnp.float32),
                "mean": jnp.zeros((64,), jnp.float32),
                "var": jnp.ones((64,), jnp.float32)},
        "conv4_w": jax.random.normal(k2, (128, 64, 1, 1), jnp.float32) * 0.02,
        "bn4": {"gamma": jnp.ones((128,), jnp.float32),
                "beta": jnp.zeros((128,), jnp.float32),
                "mean": jnp.zeros((128,), jnp.float32),
                "var": jnp.ones((128,), jnp.float32)},
    }
    return params


if __name__ == "__main__":
    key = jax.random.PRNGKey(0)
    k_params, k_x = jax.random.split(key)

    _ = init_params(k_params)  # unused in forward (mirrors the PyTorch module)

    # Small batch / spatial; channel dim must be 512 as implied by the split sizes.
    x = jax.random.normal(k_x, (2, C_TOTAL, 8, 8), jnp.float32)

    concat_out, splits = jax.jit(split_cat_forward)(x)
    jax.block_until_ready(concat_out)
    for s in splits:
        jax.block_until_ready(s)

    # sanity: concat(split(x)) == x, and splits are the channel slabs of x
    assert concat_out.shape == x.shape
    assert jnp.array_equal(concat_out, x)
    for i, s in enumerate(splits):
        assert s.shape == (2, SPLIT, 8, 8)
        assert jnp.array_equal(s, x[:, i * SPLIT:(i + 1) * SPLIT])

    print("KERNEL_OK")
</pallas_src>

<mosaic_0001>
module attributes {stable_mosaic.version = 11 : i64} {
  func.func @_split_kernel(%arg0: i32, %arg1: memref<2x4x8x1024xf32, #tpu.memory_space<vmem>>, %arg2: memref<2x8x1024xf32, #tpu.memory_space<vmem>>, %arg3: memref<2x8x1024xf32, #tpu.memory_space<vmem>>, %arg4: memref<2x8x1024xf32, #tpu.memory_space<vmem>>, %arg5: memref<2x8x1024xf32, #tpu.memory_space<vmem>>) attributes {dimension_semantics = [#tpu.dimension_semantics<parallel>], iteration_bounds = array<i64: 1>, scalar_prefetch = 0 : i64, scratch_operands = 0 : i64, tpu.core_type = #tpu.core_type<tc>, window_params = [{transform_indices = @transform_0, window_bounds = array<i64: 2, 4, 8, 1024>}, {transform_indices = @transform_1, window_bounds = array<i64: 2, 8, 1024>}, {transform_indices = @transform_2, window_bounds = array<i64: 2, 8, 1024>}, {transform_indices = @transform_3, window_bounds = array<i64: 2, 8, 1024>}, {transform_indices = @transform_4, window_bounds = array<i64: 2, 8, 1024>}]} {
    %c0 = arith.constant 0 : index
    %c0_0 = arith.constant 0 : index
    %c0_1 = arith.constant 0 : index
    %c0_2 = arith.constant 0 : index
    %0 = vector.load %arg1[%c0, %c0_0, %c0_1, %c0_2] : memref<2x4x8x1024xf32, #tpu.memory_space<vmem>>, vector<2x1x8x1024xf32>
    %1 = vector.shape_cast %0 : vector<2x1x8x1024xf32> to vector<2x8x1024xf32>
    %c0_3 = arith.constant 0 : index
    %c0_4 = arith.constant 0 : index
    %c0_5 = arith.constant 0 : index
    %2 = vector.load %arg2[%c0_3, %c0_4, %c0_5] : memref<2x8x1024xf32, #tpu.memory_space<vmem>>, vector<2x8x1024xf32>
    tpu.vector_store %arg2[%c0_3, %c0_4, %c0_5], %1 {strides = array<i32>} : memref<2x8x1024xf32, #tpu.memory_space<vmem>>, vector<2x8x1024xf32>,
    %c0_6 = arith.constant 0 : index
    %c1 = arith.constant 1 : index
    %c0_7 = arith.constant 0 : index
    %c0_8 = arith.constant 0 : index
    %3 = vector.load %arg1[%c0_6, %c1, %c0_7, %c0_8] : memref<2x4x8x1024xf32, #tpu.memory_space<vmem>>, vector<2x1x8x1024xf32>
    %4 = vector.shape_cast %3 : vector<2x1x8x1024xf32> to vector<2x8x1024xf32>
    %c0_9 = arith.constant 0 : index
    %c0_10 = arith.constant 0 : index
    %c0_11 = arith.constant 0 : index
    %5 = vector.load %arg3[%c0_9, %c0_10, %c0_11] : memref<2x8x1024xf32, #tpu.memory_space<vmem>>, vector<2x8x1024xf32>
    tpu.vector_store %arg3[%c0_9, %c0_10, %c0_11], %4 {strides = array<i32>} : memref<2x8x1024xf32, #tpu.memory_space<vmem>>, vector<2x8x1024xf32>,
    %c0_12 = arith.constant 0 : index
    %c2 = arith.constant 2 : index
    %c0_13 = arith.constant 0 : index
    %c0_14 = arith.constant 0 : index
    %6 = vector.load %arg1[%c0_12, %c2, %c0_13, %c0_14] : memref<2x4x8x1024xf32, #tpu.memory_space<vmem>>, vector<2x1x8x1024xf32>
    %7 = vector.shape_cast %6 : vector<2x1x8x1024xf32> to vector<2x8x1024xf32>
    %c0_15 = arith.constant 0 : index
    %c0_16 = arith.constant 0 : index
    %c0_17 = arith.constant 0 : index
    %8 = vector.load %arg4[%c0_15, %c0_16, %c0_17] : memref<2x8x1024xf32, #tpu.memory_space<vmem>>, vector<2x8x1024xf32>
    tpu.vector_store %arg4[%c0_15, %c0_16, %c0_17], %7 {strides = array<i32>} : memref<2x8x1024xf32, #tpu.memory_space<vmem>>, vector<2x8x1024xf32>,
    %c0_18 = arith.constant 0 : index
    %c3 = arith.constant 3 : index
    %c0_19 = arith.constant 0 : index
    %c0_20 = arith.constant 0 : index
    %9 = vector.load %arg1[%c0_18, %c3, %c0_19, %c0_20] : memref<2x4x8x1024xf32, #tpu.memory_space<vmem>>, vector<2x1x8x1024xf32>
    %10 = vector.shape_cast %9 : vector<2x1x8x1024xf32> to vector<2x8x1024xf32>
    %c0_21 = arith.constant 0 : index
    %c0_22 = arith.constant 0 : index
    %c0_23 = arith.constant 0 : index
    %11 = vector.load %arg5[%c0_21, %c0_22, %c0_23] : memref<2x8x1024xf32, #tpu.memory_space<vmem>>, vector<2x8x1024xf32>
    tpu.vector_store %arg5[%c0_21, %c0_22, %c0_23], %10 {strides = array<i32>} : memref<2x8x1024xf32, #tpu.memory_space<vmem>>, vector<2x8x1024xf32>,
    return
  }
  func.func @transform_0(%arg0: i32) -> (i32, i32, i32, i32) {
    %c0_i32 = arith.constant 0 : i32
    %c0_i32_0 = arith.constant 0 : i32
    %c0_i32_1 = arith.constant 0 : i32
    %c0_i32_2 = arith.constant 0 : i32
    return %c0_i32, %c0_i32_0, %arg0, %c0_i32_1 : i32, i32, i32, i32
  }
  func.func @transform_1(%arg0: i32) -> (i32, i32, i32) {
    %c0_i32 = arith.constant 0 : i32
    %c0_i32_0 = arith.constant 0 : i32
    %c0_i32_1 = arith.constant 0 : i32
    return %c0_i32, %arg0, %c0_i32_0 : i32, i32, i32
  }
  func.func @transform_2(%arg0: i32) -> (i32, i32, i32) {
    %c0_i32 = arith.constant 0 : i32
    %c0_i32_0 = arith.constant 0 : i32
    %c0_i32_1 = arith.constant 0 : i32
    return %c0_i32, %arg0, %c0_i32_0 : i32, i32, i32
  }
  func.func @transform_3(%arg0: i32) -> (i32, i32, i32) {
    %c0_i32 = arith.constant 0 : i32
    %c0_i32_0 = arith.constant 0 : i32
    %c0_i32_1 = arith.constant 0 : i32
    return %c0_i32, %arg0, %c0_i32_0 : i32, i32, i32
  }
  func.func @transform_4(%arg0: i32) -> (i32, i32, i32) {
    %c0_i32 = arith.constant 0 : i32
    %c0_i32_0 = arith.constant 0 : i32
    %c0_i32_1 = arith.constant 0 : i32
    return %c0_i32, %arg0, %c0_i32_0 : i32, i32, i32
  }
}

</mosaic_0001>

<llo_original>
// kernel: split_cat_forward.1
$region0: #{split_cat_forward.1}
  #allocation0 [shape = 'u32[]', space=smem, size = 0x4, offset = 0x4, fixed_abs, tag = 'smem constant byte address 0x4 - core index']
  #allocation1 [shape = 'u32[144,128]{1,0:T(1,128)}', space=vmem, size = 0x12000, scoped, tag = 'internal scratch']
  %s0 = inlined_call_operand.vmem [shape: f32[2,4,8,1024], index: 0, kind: input, shape index: {}]
  %s1 = inlined_call_operand.vmem [shape: f32[2,8,1024], index: 1, kind: output, shape index: {0}]
  %s2 = inlined_call_operand.vmem [shape: f32[2,8,1024], index: 2, kind: output, shape index: {1}]
  %s3 = inlined_call_operand.vmem [shape: f32[2,8,1024], index: 3, kind: output, shape index: {2}]
  %s4 = inlined_call_operand.vmem [shape: f32[2,8,1024], index: 4, kind: output, shape index: {3}]
  %5 = xla_tuple %s1, %s2, %s3, %s4
  %s6 = sld [smem:[#allocation0]]
  $region38: #{split_cat_forward.1} parent=0
    _
  %s8 = ssub.s32 1, %s6
  %s9 = scalar_select 0, %s8, %s6
  // Predicated region
  $region2: #{split_cat_forward.1} parent=0 // pred_check
    _
  $region3: #{split_cat_forward.1} parent=0 // pred_check_branch
    %11 = sbr.rel (0) target = $region5
  $region4: #{split_cat_forward.1} parent=0 // pred_region
    _
  $region5: #{split_cat_forward.1} parent=0 // pred_fallthru
    _
  %v12 = vld [vmem:[%s0] sm:$0xff]
  %v13 = vld [vmem:[%s0 + $0x8] sm:$0xff]
  %v14 = vld [vmem:[%s0 + $0x10] sm:$0xff]
  %v15 = vld [vmem:[%s0 + $0x18] sm:$0xff]
  %v16 = vld [vmem:[%s0 + $0x20] sm:$0xff]
  %v17 = vld [vmem:[%s0 + $0x28] sm:$0xff]
  %v18 = vld [vmem:[%s0 + $0x30] sm:$0xff]
  %v19 = vld [vmem:[%s0 + $0x38] sm:$0xff]
  %v20 = vld [vmem:[%s0 + $0x100] sm:$0xff]
  %v21 = vld [vmem:[%s0 + $0x108] sm:$0xff]
  %v22 = vld [vmem:[%s0 + $0x110] sm:$0xff]
  %v23 = vld [vmem:[%s0 + $0x118] sm:$0xff]
  %v24 = vld [vmem:[%s0 + $0x120] sm:$0xff]
  %v25 = vld [vmem:[%s0 + $0x128] sm:$0xff]
  %v26 = vld [vmem:[%s0 + $0x130] sm:$0xff]
  %v27 = vld [vmem:[%s0 + $0x138] sm:$0xff]
  %28 = vst [vmem:[%s1] sm:$0xff] %v12
  %29 = vst [vmem:[%s1 + $0x8] sm:$0xff] %v13
  %30 = vst [vmem:[%s1 + $0x10] sm:$0xff] %v14
  %31 = vst [vmem:[%s1 + $0x18] sm:$0xff] %v15
  %32 = vst [vmem:[%s1 + $0x20] sm:$0xff] %v16
  %33 = vst [vmem:[%s1 + $0x28] sm:$0xff] %v17
  %34 = vst [vmem:[%s1 + $0x30] sm:$0xff] %v18
  %35 = vst [vmem:[%s1 + $0x38] sm:$0xff] %v19
  %36 = vst [vmem:[%s1 + $0x40] sm:$0xff] %v20
  %37 = vst [vmem:[%s1 + $0x48] sm:$0xff] %v21
  %38 = vst [vmem:[%s1 + $0x50] sm:$0xff] %v22
  %39 = vst [vmem:[%s1 + $0x58] sm:$0xff] %v23
  %40 = vst [vmem:[%s1 + $0x60] sm:$0xff] %v24
  %41 = vst [vmem:[%s1 + $0x68] sm:$0xff] %v25
  %42 = vst [vmem:[%s1 + $0x70] sm:$0xff] %v26
  %43 = vst [vmem:[%s1 + $0x78] sm:$0xff] %v27
  %s44 = scalar_lea.vmem %s0, 64
  %v45 = vld [vmem:[%s44] sm:$0xff]
  %v46 = vld [vmem:[%s44 + $0x8] sm:$0xff]
  %v47 = vld [vmem:[%s44 + $0x10] sm:$0xff]
  %v48 = vld [vmem:[%s44 + $0x18] sm:$0xff]
  %v49 = vld [vmem:[%s44 + $0x20] sm:$0xff]
  %v50 = vld [vmem:[%s44 + $0x28] sm:$0xff]
  %v51 = vld [vmem:[%s44 + $0x30] sm:$0xff]
  %v52 = vld [vmem:[%s44 + $0x38] sm:$0xff]
  %v53 = vld [vmem:[%s44 + $0x100] sm:$0xff]
  %v54 = vld [vmem:[%s44 + $0x108] sm:$0xff]
  %v55 = vld [vmem:[%s44 + $0x110] sm:$0xff]
  %v56 = vld [vmem:[%s44 + $0x118] sm:$0xff]
  %v57 = vld [vmem:[%s44 + $0x120] sm:$0xff]
  %v58 = vld [vmem:[%s44 + $0x128] sm:$0xff]
  %v59 = vld [vmem:[%s44 + $0x130] sm:$0xff]
  %v60 = vld [vmem:[%s44 + $0x138] sm:$0xff]
  %61 = vst [vmem:[%s2] sm:$0xff] %v45
  %62 = vst [vmem:[%s2 + $0x8] sm:$0xff] %v46
  %63 = vst [vmem:[%s2 + $0x10] sm:$0xff] %v47
  %64 = vst [vmem:[%s2 + $0x18] sm:$0xff] %v48
  %65 = vst [vmem:[%s2 + $0x20] sm:$0xff] %v49
  %66 = vst [vmem:[%s2 + $0x28] sm:$0xff] %v50
  %67 = vst [vmem:[%s2 + $0x30] sm:$0xff] %v51
  %68 = vst [vmem:[%s2 + $0x38] sm:$0xff] %v52
  %69 = vst [vmem:[%s2 + $0x40] sm:$0xff] %v53
  %70 = vst [vmem:[%s2 + $0x48] sm:$0xff] %v54
  %71 = vst [vmem:[%s2 + $0x50] sm:$0xff] %v55
  %72 = vst [vmem:[%s2 + $0x58] sm:$0xff] %v56
  %73 = vst [vmem:[%s2 + $0x60] sm:$0xff] %v57
  %74 = vst [vmem:[%s2 + $0x68] sm:$0xff] %v58
  %75 = vst [vmem:[%s2 + $0x70] sm:$0xff] %v59
  %76 = vst [vmem:[%s2 + $0x78] sm:$0xff] %v60
  %s77 = scalar_lea.vmem %s0, 128
  %v78 = vld [vmem:[%s77] sm:$0xff]
  %v79 = vld [vmem:[%s77 + $0x8] sm:$0xff]
  %v80 = vld [vmem:[%s77 + $0x10] sm:$0xff]
  %v81 = vld [vmem:[%s77 + $0x18] sm:$0xff]
  %v82 = vld [vmem:[%s77 + $0x20] sm:$0xff]
  %v83 = vld [vmem:[%s77 + $0x28] sm:$0xff]
  %v84 = vld [vmem:[%s77 + $0x30] sm:$0xff]
  %v85 = vld [vmem:[%s77 + $0x38] sm:$0xff]
  %v86 = vld [vmem:[%s77 + $0x100] sm:$0xff]
  %v87 = vld [vmem:[%s77 + $0x108] sm:$0xff]
  %v88 = vld [vmem:[%s77 + $0x110] sm:$0xff]
  %v89 = vld [vmem:[%s77 + $0x118] sm:$0xff]
  %v90 = vld [vmem:[%s77 + $0x120] sm:$0xff]
  %v91 = vld [vmem:[%s77 + $0x128] sm:$0xff]
  %v92 = vld [vmem:[%s77 + $0x130] sm:$0xff]
  %v93 = vld [vmem:[%s77 + $0x138] sm:$0xff]
  %94 = vst [vmem:[%s3] sm:$0xff] %v78
  %95 = vst [vmem:[%s3 + $0x8] sm:$0xff] %v79
  %96 = vst [vmem:[%s3 + $0x10] sm:$0xff] %v80
  %97 = vst [vmem:[%s3 + $0x18] sm:$0xff] %v81
  %98 = vst [vmem:[%s3 + $0x20] sm:$0xff] %v82
  %99 = vst [vmem:[%s3 + $0x28] sm:$0xff] %v83
  %100 = vst [vmem:[%s3 + $0x30] sm:$0xff] %v84
  %101 = vst [vmem:[%s3 + $0x38] sm:$0xff] %v85
  %102 = vst [vmem:[%s3 + $0x40] sm:$0xff] %v86
  %103 = vst [vmem:[%s3 + $0x48] sm:$0xff] %v87
  %104 = vst [vmem:[%s3 + $0x50] sm:$0xff] %v88
  %105 = vst [vmem:[%s3 + $0x58] sm:$0xff] %v89
  %106 = vst [vmem:[%s3 + $0x60] sm:$0xff] %v90
  %107 = vst [vmem:[%s3 + $0x68] sm:$0xff] %v91
  %108 = vst [vmem:[%s3 + $0x70] sm:$0xff] %v92
  %109 = vst [vmem:[%s3 + $0x78] sm:$0xff] %v93
  %s110 = scalar_lea.vmem %s0, 192
  %v111 = vld [vmem:[%s110] sm:$0xff]
  %v112 = vld [vmem:[%s110 + $0x8] sm:$0xff]
  %v113 = vld [vmem:[%s110 + $0x10] sm:$0xff]
  %v114 = vld [vmem:[%s110 + $0x18] sm:$0xff]
  %v115 = vld [vmem:[%s110 + $0x20] sm:$0xff]
  %v116 = vld [vmem:[%s110 + $0x28] sm:$0xff]
  %v117 = vld [vmem:[%s110 + $0x30] sm:$0xff]
  %v118 = vld [vmem:[%s110 + $0x38] sm:$0xff]
  %v119 = vld [vmem:[%s110 + $0x100] sm:$0xff]
  %v120 = vld [vmem:[%s110 + $0x108] sm:$0xff]
  %v121 = vld [vmem:[%s110 + $0x110] sm:$0xff]
  %v122 = vld [vmem:[%s110 + $0x118] sm:$0xff]
  %v123 = vld [vmem:[%s110 + $0x120] sm:$0xff]
  %v124 = vld [vmem:[%s110 + $0x128] sm:$0xff]
  %v125 = vld [vmem:[%s110 + $0x130] sm:$0xff]
  %v126 = vld [vmem:[%s110 + $0x138] sm:$0xff]
  %127 = vst [vmem:[%s4] sm:$0xff] %v111
  %128 = vst [vmem:[%s4 + $0x8] sm:$0xff] %v112
  %129 = vst [vmem:[%s4 + $0x10] sm:$0xff] %v113
  %130 = vst [vmem:[%s4 + $0x18] sm:$0xff] %v114
  %131 = vst [vmem:[%s4 + $0x20] sm:$0xff] %v115
  %132 = vst [vmem:[%s4 + $0x28] sm:$0xff] %v116
  %133 = vst [vmem:[%s4 + $0x30] sm:$0xff] %v117
  %134 = vst [vmem:[%s4 + $0x38] sm:$0xff] %v118
  %135 = vst [vmem:[%s4 + $0x40] sm:$0xff] %v119
  %136 = vst [vmem:[%s4 + $0x48] sm:$0xff] %v120
  %137 = vst [vmem:[%s4 + $0x50] sm:$0xff] %v121
  %138 = vst [vmem:[%s4 + $0x58] sm:$0xff] %v122
  %139 = vst [vmem:[%s4 + $0x60] sm:$0xff] %v123
  %140 = vst [vmem:[%s4 + $0x68] sm:$0xff] %v124
  %141 = vst [vmem:[%s4 + $0x70] sm:$0xff] %v125
  %142 = vst [vmem:[%s4 + $0x78] sm:$0xff] %v126
  // Predicated region
  $region6: #{split_cat_forward.1} parent=0 // pred_check
    _
  $region7: #{split_cat_forward.1} parent=0 // pred_check_branch
    %144 = sbr.rel (0) target = $region9
  $region8: #{split_cat_forward.1} parent=0 // pred_region
    _
  $region9: #{split_cat_forward.1} parent=0 // pred_fallthru
    _
  // Predicated region
  $region10: #{split_cat_forward.1} parent=0 // pred_check
    _
  $region11: #{split_cat_forward.1} parent=0 // pred_check_branch
    %146 = sbr.rel (0) target = $region13
  $region12: #{split_cat_forward.1} parent=0 // pred_region
    _
  $region13: #{split_cat_forward.1} parent=0 // pred_fallthru
    _
  // Predicated region
  $region14: #{split_cat_forward.1} parent=0 // pred_check
    _
  $region15: #{split_cat_forward.1} parent=0 // pred_check_branch
    %148 = sbr.rel (0) target = $region17
  $region16: #{split_cat_forward.1} parent=0 // pred_region
    _
  $region17: #{split_cat_forward.1} parent=0 // pred_fallthru
    _
  // Predicated region
  $region18: #{split_cat_forward.1} parent=0 // pred_check
    _
  $region19: #{split_cat_forward.1} parent=0 // pred_check_branch
    %150 = sbr.rel (0) target = $region21
  $region20: #{split_cat_forward.1} parent=0 // pred_region
    _
  $region21: #{split_cat_forward.1} parent=0 // pred_fallthru
    _
  // Predicated region
  $region22: #{split_cat_forward.1} parent=0 // pred_check
    _
  $region23: #{split_cat_forward.1} parent=0 // pred_check_branch
    %152 = sbr.rel (0) target = $region25
  $region24: #{split_cat_forward.1} parent=0 // pred_region
    _
  $region25: #{split_cat_forward.1} parent=0 // pred_fallthru
    _
  // Predicated region
  $region26: #{split_cat_forward.1} parent=0 // pred_check
    _
  $region27: #{split_cat_forward.1} parent=0 // pred_check_branch
    %154 = sbr.rel (0) target = $region29
  $region28: #{split_cat_forward.1} parent=0 // pred_region
    _
  $region29: #{split_cat_forward.1} parent=0 // pred_fallthru
    _
  // Predicated region
  $region30: #{split_cat_forward.1} parent=0 // pred_check
    _
  $region31: #{split_cat_forward.1} parent=0 // pred_check_branch
    %156 = sbr.rel (0) target = $region33
  $region32: #{split_cat_forward.1} parent=0 // pred_region
    _
  $region33: #{split_cat_forward.1} parent=0 // pred_fallthru
    _
  // Predicated region
  $region34: #{split_cat_forward.1} parent=0 // pred_check
    _
  $region35: #{split_cat_forward.1} parent=0 // pred_check_branch
    %158 = sbr.rel (0) target = $region37
  $region36: #{split_cat_forward.1} parent=0 // pred_region
    _
  $region37: #{split_cat_forward.1} parent=0 // pred_fallthru
    _

</llo_original>
